<compile_context>
chip_gen: v7x
topology: tpu7x:2x2x1
jax: 0.10.0
libtpu: 0.0.40
codegen_flags: <defaults>
</compile_context>

<pallas_src>
import functools

import jax
import jax.numpy as jnp
from jax import lax
from jax.experimental import pallas as pl
from jax.experimental.pallas import tpu as pltpu


# ---------------------------------------------------------------------------
# Shift helpers: out = x shifted by +-1 along a minor axis (pure rotate, border
# handling is done by the caller's masks).  Aligned shapes use the XLU rotate;
# unaligned shapes fall back to slice+concat (same semantics, slower lowering).
# ---------------------------------------------------------------------------
def _roll_rows(x, d):
    """out[r, :] = x[(r + d) mod R, :]   (d in {-1, +1})."""
    r = x.shape[0]
    if r % 8 == 0:
        return pltpu.roll(x, (-d) % r, axis=0)
    # TODO(synk): unaligned-R fallback path (slice+concat); exact but may relayout.
    zero = jnp.zeros((1, x.shape[1]), x.dtype)
    if d > 0:
        return jnp.concatenate([x[1:], zero], axis=0)
    return jnp.concatenate([zero, x[:-1]], axis=0)


def _roll_cols(x, d):
    """out[:, j] = x[:, (j + d) mod W]   (d in {-1, +1})."""
    w = x.shape[1]
    if w % 128 == 0:
        return pltpu.roll(x, (-d) % w, axis=1)
    # TODO(synk): unaligned-W fallback path (slice+concat); exact but may relayout.
    zero = jnp.zeros((x.shape[0], 1), x.dtype)
    if d > 0:
        return jnp.concatenate([x[:, 1:], zero], axis=1)
    return jnp.concatenate([zero, x[:, :-1]], axis=1)


def _l_grad5_kernel(a_ref, b_ref, c_ref, d_ref, e_ref, fused_ref, out_ref, *, img_h):
    f32 = jnp.float32
    x = fused_ref[...].astype(f32)                  # (R, W) slab of Gb stacked fused images
    R, W = x.shape

    # Border masks (computed once per step).  Within the stacked slab, image rows repeat
    # with period img_h; top/bottom masks also neutralize the roll wrap between images.
    col = lax.broadcasted_iota(jnp.int32, (R, W), 1)
    row = lax.broadcasted_iota(jnp.int32, (R, W), 0)
    if (img_h & (img_h - 1)) == 0:                  # power-of-two H -> cheap AND
        rm = row & (img_h - 1)
    else:
        rm = row % img_h
    has_l = col > 0
    has_r = col < W - 1
    has_u = rm > 0
    has_d = rm < img_h - 1

    # Horizontal 3-tap pass (lane shifts; zero padding at the image border).
    x_l = jnp.where(has_l, _roll_cols(x, -1), 0.0)          # x[i, j-1]
    x_r = jnp.where(has_r, _roll_cols(x, +1), 0.0)          # x[i, j+1]
    hd = x_r - x_l                                          # derivative tap
    hs = x_l + 2.0 * x + x_r                                # smoothing tap

    # Vertical 3-tap pass (sublane shifts; stacked-image boundaries are zero-masked).
    sobel_x = (jnp.where(has_u, _roll_rows(hd, -1), 0.0) + 2.0 * hd
               + jnp.where(has_d, _roll_rows(hd, +1), 0.0))
    sobel_y = (jnp.where(has_u, _roll_rows(hs, -1), 0.0)
               - jnp.where(has_d, _roll_rows(hs, +1), 0.0))
    grad_fused = jnp.abs(sobel_x) + jnp.abs(sobel_y)

    # gradient_joint = element-wise max of the RAW input images (as in the spec).
    joint = jnp.maximum(
        jnp.maximum(jnp.maximum(a_ref[...].astype(f32), b_ref[...].astype(f32)),
                    jnp.maximum(c_ref[...].astype(f32), d_ref[...].astype(f32))),
        e_ref[...].astype(f32))

    # Lane-dense per-step partial sum (sublane reduction only); final mean in the wrapper.
    out_ref[...] = jnp.sum(jnp.abs(grad_fused - joint), axis=0).reshape(out_ref.shape)


def _pick_group_size(G, H, W, in_itemsize, vmem_budget):
    """Largest divisor Gb of G whose (Gb*H, W) step working set fits the VMEM budget,
    with sublane-aligned blocks, preferring >= 2 grid steps (v7x megacore)."""
    # Per image per step: 6 double-buffered input tiles + ~6 live f32 temporaries.
    per_img = H * W * (2 * 6 * in_itemsize + 6 * 4)
    max_gb = max(1, int(vmem_budget // max(per_img, 1)))
    divisors = [d for d in range(1, G + 1) if G % d == 0]
    legal = [d for d in divisors if d <= max_gb and ((d * H) % 8 == 0 or d == G)]
    if not legal:
        # TODO(synk): row-tile with a 1-row halo if even a single image overflows VMEM.
        legal = [d for d in divisors if (d * H) % 8 == 0] or [1]
    gb = legal[-1]
    multi_step = [d for d in legal if G // d >= 2]
    if multi_step:
        gb = multi_step[-1]
    return gb


@jax.jit
def l_grad5(image_A, image_B, image_C, image_D, image_E, image_fused):
    N, C, H, W = image_fused.shape
    G = N * C
    itemsize = jnp.dtype(image_fused.dtype).itemsize

    # Generation-aware VMEM cap (64 MiB on v7x, 128 MiB on v5e/v6e); keep headroom.
    try:
        vmem_cap = int(pltpu.get_tpu_info().vmem_capacity_bytes)
    except Exception:
        vmem_cap = 64 << 20
    vmem_budget = int(min(vmem_cap // 2, 48 << 20))

    Gb = _pick_group_size(G, H, W, itemsize, vmem_budget)
    steps = G // Gb

    # Free reshape: one lane-dense (G*H, W) slab per image stream (no padded copies, no
    # wrapper-side casts; f32 promotion happens in-kernel after the DMA).
    imgs = [x.reshape(G * H, W)
            for x in (image_A, image_B, image_C, image_D, image_E, image_fused)]

    img_spec = pl.BlockSpec((Gb * H, W), lambda g: (g, 0))
    out_spec = pl.BlockSpec((1, 1, W), lambda g: (g, 0, 0))

    per_img = H * W * (2 * 6 * itemsize + 6 * 4)
    vmem_limit = int(min(max(Gb * per_img + (2 << 20), 8 << 20), vmem_budget))

    cost = pl.CostEstimate(
        flops=24 * G * H * W,                       # ~per-element stencil/abs/max work
        transcendentals=0,
        bytes_accessed=6 * G * H * W * itemsize + steps * W * 4,
    )

    partial = pl.pallas_call(
        functools.partial(_l_grad5_kernel, img_h=H),
        out_shape=jax.ShapeDtypeStruct((steps, 1, W), jnp.float32),
        grid=(steps,),
        in_specs=[img_spec] * 6,
        out_specs=out_spec,
        compiler_params=pltpu.CompilerParams(
            dimension_semantics=("parallel",),
            vmem_limit_bytes=vmem_limit,
        ),
        cost_estimate=cost,
    )(*imgs)

    # Tiny epilogue: sum the per-step lane rows and take the mean.
    return jnp.sum(partial) / jnp.float32(N * C * H * W)


def _reference(image_A, image_B, image_C, image_D, image_E, image_fused):
    """Pure-JAX reference: explicit zero-padded 3x3 Sobel (exact)."""
    def sobel_abs(x):
        H, W = x.shape[-2], x.shape[-1]
        xp = jnp.pad(x, ((0, 0), (0, 0), (1, 1), (1, 1)))

        def s(di, dj):
            return xp[:, :, 1 + di:1 + di + H, 1 + dj:1 + dj + W]

        sx = (-s(-1, -1) + s(-1, 1) - 2 * s(0, -1) + 2 * s(0, 1) - s(1, -1) + s(1, 1))
        sy = (s(-1, -1) + 2 * s(-1, 0) + s(-1, 1) - s(1, -1) - 2 * s(1, 0) - s(1, 1))
        return jnp.abs(sx) + jnp.abs(sy)

    grad_fused = sobel_abs(image_fused)
    joint = jnp.maximum(
        jnp.maximum(jnp.maximum(jnp.maximum(image_A, image_B), image_C), image_D),
        image_E)
    return jnp.mean(jnp.abs(grad_fused - joint))


if __name__ == "__main__":
    key = jax.random.PRNGKey(0)
    # NCHW; the Sobel weight is (1, 1, 3, 3) -> single channel.  W is a multiple of 128 so
    # the image slabs are lane-dense (production-shape guidance); G=4 -> 2 parallel grid
    # steps of 2 batched images each.
    shape = (4, 1, 16, 128)
    keys = jax.random.split(key, 6)
    imgs = [jax.random.uniform(k, shape, dtype=jnp.float32) for k in keys]

    out = jax.block_until_ready(l_grad5(*imgs))
    ref = _reference(*imgs)
    # Pure f32 VPU stencil -> only reduction-order rounding differences vs the reference.
    assert jnp.allclose(out, ref, rtol=1e-4, atol=1e-6), (out, ref)
    print("KERNEL_OK")
</pallas_src>

<mosaic_0001>
module attributes {stable_mosaic.version = 11 : i64} {
  func.func @_l_grad5_kernel(%arg0: i32, %arg1: memref<32x128xf32, #tpu.memory_space<vmem>>, %arg2: memref<32x128xf32, #tpu.memory_space<vmem>>, %arg3: memref<32x128xf32, #tpu.memory_space<vmem>>, %arg4: memref<32x128xf32, #tpu.memory_space<vmem>>, %arg5: memref<32x128xf32, #tpu.memory_space<vmem>>, %arg6: memref<32x128xf32, #tpu.memory_space<vmem>>, %arg7: memref<1x1x128xf32, #tpu.memory_space<vmem>>) attributes {dimension_semantics = [#tpu.dimension_semantics<parallel>], iteration_bounds = array<i64: 2>, scalar_prefetch = 0 : i64, scratch_operands = 0 : i64, tpu.core_type = #tpu.core_type<tc>, window_params = [{transform_indices = @transform_0, window_bounds = array<i64: 32, 128>}, {transform_indices = @transform_1, window_bounds = array<i64: 32, 128>}, {transform_indices = @transform_2, window_bounds = array<i64: 32, 128>}, {transform_indices = @transform_3, window_bounds = array<i64: 32, 128>}, {transform_indices = @transform_4, window_bounds = array<i64: 32, 128>}, {transform_indices = @transform_5, window_bounds = array<i64: 32, 128>}, {transform_indices = @transform_6, window_bounds = array<i64: 1, 1, 128>}]} {
    %c0 = arith.constant 0 : index
    %c0_0 = arith.constant 0 : index
    %0 = vector.load %arg6[%c0, %c0_0] : memref<32x128xf32, #tpu.memory_space<vmem>>, vector<32x128xf32>
    %1 = tpu.iota {dimensions = array<i32: 1>} : vector<32x128xi32>
    %2 = tpu.iota {dimensions = array<i32: 0>} : vector<32x128xi32>
    %c15_i32 = arith.constant 15 : i32
    %3 = vector.broadcast %c15_i32 : i32 to vector<32x128xi32>
    %4 = arith.andi %2, %3 : vector<32x128xi32>
    %c0_i32 = arith.constant 0 : i32
    %5 = vector.broadcast %c0_i32 : i32 to vector<32x128xi32>
    %6 = arith.cmpi sgt, %1, %5 : vector<32x128xi32>
    %c127_i32 = arith.constant 127 : i32
    %7 = vector.broadcast %c127_i32 : i32 to vector<32x128xi32>
    %8 = arith.cmpi slt, %1, %7 : vector<32x128xi32>
    %c0_i32_1 = arith.constant 0 : i32
    %9 = vector.broadcast %c0_i32_1 : i32 to vector<32x128xi32>
    %10 = arith.cmpi sgt, %4, %9 : vector<32x128xi32>
    %c15_i32_2 = arith.constant 15 : i32
    %11 = vector.broadcast %c15_i32_2 : i32 to vector<32x128xi32>
    %12 = arith.cmpi slt, %4, %11 : vector<32x128xi32>
    %c1_i32 = arith.constant 1 : i32
    %13 = tpu.dynamic_rotate %0 by %c1_i32 dim 1 : vector<32x128xf32>, i32 -> vector<32x128xf32>
    %cst = arith.constant 0.000000e+00 : f32
    %14 = vector.broadcast %cst : f32 to vector<32x128xf32>
    %15 = arith.select %6, %13, %14 : vector<32x128xi1>, vector<32x128xf32>
    %c127_i32_3 = arith.constant 127 : i32
    %16 = tpu.dynamic_rotate %0 by %c127_i32_3 dim 1 : vector<32x128xf32>, i32 -> vector<32x128xf32>
    %cst_4 = arith.constant 0.000000e+00 : f32
    %17 = vector.broadcast %cst_4 : f32 to vector<32x128xf32>
    %18 = arith.select %8, %16, %17 : vector<32x128xi1>, vector<32x128xf32>
    %19 = arith.subf %18, %15 : vector<32x128xf32>
    %cst_5 = arith.constant 2.000000e+00 : f32
    %20 = vector.broadcast %cst_5 : f32 to vector<32x128xf32>
    %21 = arith.mulf %20, %0 : vector<32x128xf32>
    %22 = arith.addf %15, %21 : vector<32x128xf32>
    %23 = arith.addf %22, %18 : vector<32x128xf32>
    %c1_i32_6 = arith.constant 1 : i32
    %24 = tpu.dynamic_rotate %19 by %c1_i32_6 dim 0 : vector<32x128xf32>, i32 -> vector<32x128xf32>
    %cst_7 = arith.constant 0.000000e+00 : f32
    %25 = vector.broadcast %cst_7 : f32 to vector<32x128xf32>
    %26 = arith.select %10, %24, %25 : vector<32x128xi1>, vector<32x128xf32>
    %cst_8 = arith.constant 2.000000e+00 : f32
    %27 = vector.broadcast %cst_8 : f32 to vector<32x128xf32>
    %28 = arith.mulf %27, %19 : vector<32x128xf32>
    %29 = arith.addf %26, %28 : vector<32x128xf32>
    %c31_i32 = arith.constant 31 : i32
    %30 = tpu.dynamic_rotate %19 by %c31_i32 dim 0 : vector<32x128xf32>, i32 -> vector<32x128xf32>
    %cst_9 = arith.constant 0.000000e+00 : f32
    %31 = vector.broadcast %cst_9 : f32 to vector<32x128xf32>
    %32 = arith.select %12, %30, %31 : vector<32x128xi1>, vector<32x128xf32>
    %33 = arith.addf %29, %32 : vector<32x128xf32>
    %c1_i32_10 = arith.constant 1 : i32
    %34 = tpu.dynamic_rotate %23 by %c1_i32_10 dim 0 : vector<32x128xf32>, i32 -> vector<32x128xf32>
    %cst_11 = arith.constant 0.000000e+00 : f32
    %35 = vector.broadcast %cst_11 : f32 to vector<32x128xf32>
    %36 = arith.select %10, %34, %35 : vector<32x128xi1>, vector<32x128xf32>
    %c31_i32_12 = arith.constant 31 : i32
    %37 = tpu.dynamic_rotate %23 by %c31_i32_12 dim 0 : vector<32x128xf32>, i32 -> vector<32x128xf32>
    %cst_13 = arith.constant 0.000000e+00 : f32
    %38 = vector.broadcast %cst_13 : f32 to vector<32x128xf32>
    %39 = arith.select %12, %37, %38 : vector<32x128xi1>, vector<32x128xf32>
    %40 = arith.subf %36, %39 : vector<32x128xf32>
    %41 = math.absf %33 : vector<32x128xf32>
    %42 = math.absf %40 : vector<32x128xf32>
    %43 = arith.addf %41, %42 : vector<32x128xf32>
    %c0_14 = arith.constant 0 : index
    %c0_15 = arith.constant 0 : index
    %44 = vector.load %arg1[%c0_14, %c0_15] : memref<32x128xf32, #tpu.memory_space<vmem>>, vector<32x128xf32>
    %c0_16 = arith.constant 0 : index
    %c0_17 = arith.constant 0 : index
    %45 = vector.load %arg2[%c0_16, %c0_17] : memref<32x128xf32, #tpu.memory_space<vmem>>, vector<32x128xf32>
    %46 = arith.maximumf %44, %45 : vector<32x128xf32>
    %c0_18 = arith.constant 0 : index
    %c0_19 = arith.constant 0 : index
    %47 = vector.load %arg3[%c0_18, %c0_19] : memref<32x128xf32, #tpu.memory_space<vmem>>, vector<32x128xf32>
    %c0_20 = arith.constant 0 : index
    %c0_21 = arith.constant 0 : index
    %48 = vector.load %arg4[%c0_20, %c0_21] : memref<32x128xf32, #tpu.memory_space<vmem>>, vector<32x128xf32>
    %49 = arith.maximumf %47, %48 : vector<32x128xf32>
    %50 = arith.maximumf %46, %49 : vector<32x128xf32>
    %c0_22 = arith.constant 0 : index
    %c0_23 = arith.constant 0 : index
    %51 = vector.load %arg5[%c0_22, %c0_23] : memref<32x128xf32, #tpu.memory_space<vmem>>, vector<32x128xf32>
    %52 = arith.maximumf %50, %51 : vector<32x128xf32>
    %53 = arith.subf %43, %52 : vector<32x128xf32>
    %54 = math.absf %53 : vector<32x128xf32>
    %cst_24 = arith.constant dense<0.000000e+00> : vector<128xf32>
    %55 = vector.multi_reduction <add>, %54, %cst_24 [0] : vector<32x128xf32> to vector<128xf32>
    %56 = vector.shape_cast %55 : vector<128xf32> to vector<1x1x128xf32>
    %c0_25 = arith.constant 0 : index
    %c0_26 = arith.constant 0 : index
    %c0_27 = arith.constant 0 : index
    %57 = vector.load %arg7[%c0_25, %c0_26, %c0_27] : memref<1x1x128xf32, #tpu.memory_space<vmem>>, vector<1x1x128xf32>
    tpu.vector_store %arg7[%c0_25, %c0_26, %c0_27], %56 {strides = array<i32>} : memref<1x1x128xf32, #tpu.memory_space<vmem>>, vector<1x1x128xf32>,
    return
  }
  func.func @transform_0(%arg0: i32) -> (i32, i32) {
    %c0_i32 = arith.constant 0 : i32
    %c0_i32_0 = arith.constant 0 : i32
    return %arg0, %c0_i32 : i32, i32
  }
  func.func @transform_1(%arg0: i32) -> (i32, i32) {
    %c0_i32 = arith.constant 0 : i32
    %c0_i32_0 = arith.constant 0 : i32
    return %arg0, %c0_i32 : i32, i32
  }
  func.func @transform_2(%arg0: i32) -> (i32, i32) {
    %c0_i32 = arith.constant 0 : i32
    %c0_i32_0 = arith.constant 0 : i32
    return %arg0, %c0_i32 : i32, i32
  }
  func.func @transform_3(%arg0: i32) -> (i32, i32) {
    %c0_i32 = arith.constant 0 : i32
    %c0_i32_0 = arith.constant 0 : i32
    return %arg0, %c0_i32 : i32, i32
  }
  func.func @transform_4(%arg0: i32) -> (i32, i32) {
    %c0_i32 = arith.constant 0 : i32
    %c0_i32_0 = arith.constant 0 : i32
    return %arg0, %c0_i32 : i32, i32
  }
  func.func @transform_5(%arg0: i32) -> (i32, i32) {
    %c0_i32 = arith.constant 0 : i32
    %c0_i32_0 = arith.constant 0 : i32
    return %arg0, %c0_i32 : i32, i32
  }
  func.func @transform_6(%arg0: i32) -> (i32, i32, i32) {
    %c0_i32 = arith.constant 0 : i32
    %c0_i32_0 = arith.constant 0 : i32
    %c0_i32_1 = arith.constant 0 : i32
    return %arg0, %c0_i32, %c0_i32_0 : i32, i32, i32
  }
}

</mosaic_0001>

<llo_original>
// kernel: l_grad5.1
$region0: #{l_grad5.1}
  #allocation0 [shape = 'u32[]', space=smem, size = 0x4, offset = 0x4, fixed_abs, tag = 'smem constant byte address 0x4 - core index']
  #allocation1 [shape = 'u32[144,128]{1,0:T(1,128)}', space=vmem, size = 0x12000, scoped, tag = 'internal scratch']
  %s0 = inlined_call_operand.hbm [shape: f32[64,128], index: 0, kind: input, shape index: {}]
  %s1 = inlined_call_operand.hbm [shape: f32[64,128], index: 1, kind: input, shape index: {}]
  %s2 = inlined_call_operand.hbm [shape: f32[64,128], index: 2, kind: input, shape index: {}]
  %s3 = inlined_call_operand.hbm [shape: f32[64,128], index: 3, kind: input, shape index: {}]
  %s4 = inlined_call_operand.hbm [shape: f32[64,128], index: 4, kind: input, shape index: {}]
  %s5 = inlined_call_operand.hbm [shape: f32[64,128], index: 5, kind: input, shape index: {}]
  %s6 = inlined_call_operand.vmem [shape: f32[2,1,128], index: 6, kind: output, shape index: {}]
  %s7 = sld [smem:[#allocation0]]
  $region81: #{l_grad5.1} parent=0
    _
  %s9 = ssub.s32 1, %s7
  %s10 = scalar_select 0, %s9, %s7
  $region1: #{l_grad5.1} parent=0
    #allocation2 [shape = 'u8[32768]{0}', space=vmem, size = 0x8000, scoped, tag = 'input window, operand 0']
    #allocation3 [shape = 's32[2]{0}', space=sflag, size = 0x8, scoped, tag = 'scoped memory for l_grad5.1']
    #allocation4 [shape = 'u8[32768]{0}', space=vmem, size = 0x8000, scoped, tag = 'input window, operand 1']
    #allocation5 [shape = 's32[2]{0}', space=sflag, size = 0x8, scoped, tag = 'scoped memory for l_grad5.1']
    #allocation6 [shape = 'u8[32768]{0}', space=vmem, size = 0x8000, scoped, tag = 'input window, operand 2']
    #allocation7 [shape = 'u8[32768]{0}', space=vmem, size = 0x8000, scoped, tag = 'input window, operand 3']
    #allocation8 [shape = 's32[2]{0}', space=sflag, size = 0x8, scoped, tag = 'scoped memory for l_grad5.1']
    #allocation9 [shape = 'u8[32768]{0}', space=vmem, size = 0x8000, scoped, tag = 'input window, operand 4']
    #allocation10 [shape = 'u8[32768]{0}', space=vmem, size = 0x8000, scoped, tag = 'input window, operand 5']
    #allocation11 [shape = 's32[2]{0}', space=sflag, size = 0x8, scoped, tag = 'scoped memory for l_grad5.1']
    %11 = vsyncpa [#allocation3], 0
    %s12 = scalar_lea.sflag [#allocation3], 1
    %13 = vsyncpa %s12, 0
    %14 = vsyncpa [#allocation5], 0
    %s15 = scalar_lea.sflag [#allocation5], 1
    %16 = vsyncpa %s15, 0
    %17 = vsyncpa [#allocation8], 0
    %s18 = scalar_lea.sflag [#allocation8], 1
    %19 = vsyncpa %s18, 0
    %20 = vsyncpa [#allocation11], 0
    %s21 = scalar_lea.sflag [#allocation11], 1
    %22 = vsyncpa %s21, 0
    loop: start=0, step=1, limit=4
    $region2: #{l_grad5.1} parent=1 // loop_pre_header
      _
    $region3: #{l_grad5.1} parent=1 // loop_header
      %s24 = sphi 0, %s28
      %p25 = scmp.ge.s32.totalorder %s24, 4
      %s34 = sphi 0, %s36
      %s37 = sphi 0, %s34
      %s38 = sphi 0, %s37
      %s54 = sphi 0, %s38
      %s60 = sphi 0, %s62
      %s63 = sphi 0, %s60
      %s64 = sphi 0, %s63
      %s80 = sphi 0, %s64
      %s86 = sphi 0, %s88
      %s89 = sphi 0, %s86
      %s90 = sphi 0, %s89
      %s106 = sphi 0, %s90
      %s112 = sphi 0, %s114
      %s115 = sphi 0, %s112
      %s116 = sphi 0, %s115
      %s132 = sphi 0, %s116
      %s138 = sphi 0, %s140
      %s141 = sphi 0, %s138
      %s142 = sphi 0, %s141
      %s158 = sphi 0, %s142
      %s164 = sphi 0, %s166
      %s167 = sphi 0, %s164
      %s168 = sphi 0, %s167
      %s184 = sphi 0, %s168
      %s190 = sphi 0, %s192
      %s193 = sphi 0, %s190
      %s194 = sphi 0, %s193
      %s210 = sphi 0, %s194
    $region4: #{l_grad5.1} parent=1 // loop_header_branch
      %27 = sbr.rel (%p25) target = $region8
    $region5: #{l_grad5.1} parent=1 // loop_body
      %s29 = ssub.s32 %s24, 1
      %s30 = ssub.s32 %s24, 2
      %s31 = sadd.s32 %s24, 1
      %s32 = ssub.s32 %s24, %s31
      %p33 = scmp.eq.s32.totalorder %s32, 0
      %s35 = sadd.s32 %s34, 1
      %s36 = scalar_select %p33, %s34, %s35
      %p39 = pneg %p33
      %p40 = scmp.eq.s32.totalorder %s24, 1
      %p41 = por %p39, %p40
      %p42 = scmp.ne.s32.totalorder %s34, %s37
      %p43 = scmp.eq.s32.totalorder %s24, 0
      %p44 = por %p42, %p43
      %p45 = scmp.ne.s32.totalorder %s34, %s37
      %p46 = scmp.eq.s32.totalorder %s29, 1
      %p47 = por %p45, %p46
      %p48 = scmp.ne.s32.totalorder %s37, %s38
      %p49 = scmp.eq.s32.totalorder %s29, 0
      %p50 = por %p48, %p49
      %p51 = scmp.ne.s32.totalorder %s37, %s38
      %p52 = scmp.eq.s32.totalorder %s30, 1
      %p53 = por %p51, %p52
      %p55 = scmp.ne.s32.totalorder %s38, %s54
      %p56 = scmp.eq.s32.totalorder %s30, 0
      %p57 = por %p55, %p56
      %s58 = ssub.s32 %s24, %s31
      %p59 = scmp.eq.s32.totalorder %s58, 0
      %s61 = sadd.s32 %s60, 1
      %s62 = scalar_select %p59, %s60, %s61
      %p65 = pneg %p59
      %p66 = scmp.eq.s32.totalorder %s24, 1
      %p67 = por %p65, %p66
      %p68 = scmp.ne.s32.totalorder %s60, %s63
      %p69 = scmp.eq.s32.totalorder %s24, 0
      %p70 = por %p68, %p69
      %p71 = scmp.ne.s32.totalorder %s60, %s63
      %p72 = scmp.eq.s32.totalorder %s29, 1
      %p73 = por %p71, %p72
      %p74 = scmp.ne.s32.totalorder %s63, %s64
      %p75 = scmp.eq.s32.totalorder %s29, 0
      %p76 = por %p74, %p75
      %p77 = scmp.ne.s32.totalorder %s63, %s64
      %p78 = scmp.eq.s32.totalorder %s30, 1
      %p79 = por %p77, %p78
      %p81 = scmp.ne.s32.totalorder %s64, %s80
      %p82 = scmp.eq.s32.totalorder %s30, 0
      %p83 = por %p81, %p82
      %s84 = ssub.s32 %s24, %s31
      %p85 = scmp.eq.s32.totalorder %s84, 0
      %s87 = sadd.s32 %s86, 1
      %s88 = scalar_select %p85, %s86, %s87
      %p91 = pneg %p85
      %p92 = scmp.eq.s32.totalorder %s24, 1
      %p93 = por %p91, %p92
      %p94 = scmp.ne.s32.totalorder %s86, %s89
      %p95 = scmp.eq.s32.totalorder %s24, 0
      %p96 = por %p94, %p95
      %p97 = scmp.ne.s32.totalorder %s86, %s89
      %p98 = scmp.eq.s32.totalorder %s29, 1
      %p99 = por %p97, %p98
      %p100 = scmp.ne.s32.totalorder %s89, %s90
      %p101 = scmp.eq.s32.totalorder %s29, 0
      %p102 = por %p100, %p101
      %p103 = scmp.ne.s32.totalorder %s89, %s90
      %p104 = scmp.eq.s32.totalorder %s30, 1
      %p105 = por %p103, %p104
      %p107 = scmp.ne.s32.totalorder %s90, %s106
      %p108 = scmp.eq.s32.totalorder %s30, 0
      %p109 = por %p107, %p108
      %s110 = ssub.s32 %s24, %s31
      %p111 = scmp.eq.s32.totalorder %s110, 0
      %s113 = sadd.s32 %s112, 1
      %s114 = scalar_select %p111, %s112, %s113
      %p117 = pneg %p111
      %p118 = scmp.eq.s32.totalorder %s24, 1
      %p119 = por %p117, %p118
      %p120 = scmp.ne.s32.totalorder %s112, %s115
      %p121 = scmp.eq.s32.totalorder %s24, 0
      %p122 = por %p120, %p121
      %p123 = scmp.ne.s32.totalorder %s112, %s115
      %p124 = scmp.eq.s32.totalorder %s29, 1
      %p125 = por %p123, %p124
      %p126 = scmp.ne.s32.totalorder %s115, %s116
      %p127 = scmp.eq.s32.totalorder %s29, 0
      %p128 = por %p126, %p127
      %p129 = scmp.ne.s32.totalorder %s115, %s116
      %p130 = scmp.eq.s32.totalorder %s30, 1
      %p131 = por %p129, %p130
      %p133 = scmp.ne.s32.totalorder %s116, %s132
      %p134 = scmp.eq.s32.totalorder %s30, 0
      %p135 = por %p133, %p134
      %s136 = ssub.s32 %s24, %s31
      %p137 = scmp.eq.s32.totalorder %s136, 0
      %s139 = sadd.s32 %s138, 1
      %s140 = scalar_select %p137, %s138, %s139
      %p143 = pneg %p137
      %p144 = scmp.eq.s32.totalorder %s24, 1
      %p145 = por %p143, %p144
      %p146 = scmp.ne.s32.totalorder %s138, %s141
      %p147 = scmp.eq.s32.totalorder %s24, 0
      %p148 = por %p146, %p147
      %p149 = scmp.ne.s32.totalorder %s138, %s141
      %p150 = scmp.eq.s32.totalorder %s29, 1
      %p151 = por %p149, %p150
      %p152 = scmp.ne.s32.totalorder %s141, %s142
      %p153 = scmp.eq.s32.totalorder %s29, 0
      %p154 = por %p152, %p153
      %p155 = scmp.ne.s32.totalorder %s141, %s142
      %p156 = scmp.eq.s32.totalorder %s30, 1
      %p157 = por %p155, %p156
      %p159 = scmp.ne.s32.totalorder %s142, %s158
      %p160 = scmp.eq.s32.totalorder %s30, 0
      %p161 = por %p159, %p160
      %s162 = ssub.s32 %s24, %s31
      %p163 = scmp.eq.s32.totalorder %s162, 0
      %s165 = sadd.s32 %s164, 1
      %s166 = scalar_select %p163, %s164, %s165
      %p169 = pneg %p163
      %p170 = scmp.eq.s32.totalorder %s24, 1
      %p171 = por %p169, %p170
      %p172 = scmp.ne.s32.totalorder %s164, %s167
      %p173 = scmp.eq.s32.totalorder %s24, 0
      %p174 = por %p172, %p173
      %p175 = scmp.ne.s32.totalorder %s164, %s167
      %p176 = scmp.eq.s32.totalorder %s29, 1
      %p177 = por %p175, %p176
      %p178 = scmp.ne.s32.totalorder %s167, %s168
      %p179 = scmp.eq.s32.totalorder %s29, 0
      %p180 = por %p178, %p179
      %p181 = scmp.ne.s32.totalorder %s167, %s168
      %p182 = scmp.eq.s32.totalorder %s30, 1
      %p183 = por %p181, %p182
      %p185 = scmp.ne.s32.totalorder %s168, %s184
      %p186 = scmp.eq.s32.totalorder %s30, 0
      %p187 = por %p185, %p186
      %s188 = ssub.s32 %s24, %s31
      %p189 = scmp.eq.s32.totalorder %s188, 0
      %s191 = sadd.s32 %s190, 1
      %s192 = scalar_select %p189, %s190, %s191
      %p195 = pneg %p189
      %p196 = scmp.eq.s32.totalorder %s24, 1
      %p197 = por %p195, %p196
      %p198 = scmp.ne.s32.totalorder %s190, %s193
      %p199 = scmp.eq.s32.totalorder %s24, 0
      %p200 = por %p198, %p199
      %p201 = scmp.ne.s32.totalorder %s190, %s193
      %p202 = scmp.eq.s32.totalorder %s29, 1
      %p203 = por %p201, %p202
      %p204 = scmp.ne.s32.totalorder %s193, %s194
      %p205 = scmp.eq.s32.totalorder %s29, 0
      %p206 = por %p204, %p205
      %p207 = scmp.ne.s32.totalorder %s193, %s194
      %p208 = scmp.eq.s32.totalorder %s30, 1
      %p209 = por %p207, %p208
      %p211 = scmp.ne.s32.totalorder %s194, %s210
      %p212 = scmp.eq.s32.totalorder %s30, 0
      %p213 = por %p211, %p212
      %p214 = scmp.le.s32.totalorder 1, %s24
      %p215 = scmp.lt.s32.totalorder %s24, 3
      %p216 = pnand %p214, %p215
      %p217 = pneg %p216
      // Predicated region
      $region9: #{l_grad5.1} parent=5 // pred_check
        _
      $region10: #{l_grad5.1} parent=5 // pred_check_branch
        %219 = sbr.rel (%p216) target = $region12
      $region11: #{l_grad5.1} parent=5 // pred_region
        %s220 = ssub.s32 %s24, 1
      $region12: #{l_grad5.1} parent=5 // pred_fallthru
        _
      %p221 = scmp.lt.s32.totalorder %s24, 2
      // Predicated region
      $region13: #{l_grad5.1} parent=5 // pred_check
        %p222 = pneg %p221
      $region14: #{l_grad5.1} parent=5 // pred_check_branch
        %224 = sbr.rel (%p222) target = $region16
      $region15: #{l_grad5.1} parent=5 // pred_region
        // Predicated region
        $region17: #{l_grad5.1} parent=15 // pred_check
          %p225 = pneg %p44
        $region18: #{l_grad5.1} parent=15 // pred_check_branch
          %227 = sbr.rel (%p225) target = $region20
        $region19: #{l_grad5.1} parent=15 // pred_region
          %s228 = sand.u32 %s34, 1
          %s229 = scalar_lea.sflag [#allocation3], %s228
          %s230 = sand.u32 %s34, 1
          %s231 = smul.addr %s230, 32
          %s232 = scalar_lea.vmem [#allocation2], %s231
          %s233 = smul.u32 4, %s24
          %s235 = ssub.s32 512, 512
          %236 = vsyncadd %s229, %s235
          %s237 = smul.addr %s233, 128
          %s238 = scalar_lea.hbm %s0, %s237
          %s239 = sshll.u32 %s232, 4
          %s240 = int_to_ptr.vmem [resolvable:$true] %s239
          %245 = dma.hbm_to_vmem [thread:$0]  %s238, 512, %s240, %s229, 128, 128, 8
        $region20: #{l_grad5.1} parent=15 // pred_fallthru
          _
        // Predicated region
        $region21: #{l_grad5.1} parent=15 // pred_check
          %p246 = pneg %p70
        $region22: #{l_grad5.1} parent=15 // pred_check_branch
          %248 = sbr.rel (%p246) target = $region24
        $region23: #{l_grad5.1} parent=15 // pred_region
          %s249 = sand.u32 %s24, 1
          %s250 = scalar_lea.sflag [#allocation5], %s249
          %s251 = sand.u32 %s60, 1
          %s252 = smul.addr %s251, 32
          %s253 = scalar_lea.vmem [#allocation4], %s252
          %s254 = smul.u32 4, %s24
          %s256 = ssub.s32 512, 512
          %257 = vsyncadd %s250, %s256
          %s258 = smul.addr %s254, 128
          %s259 = scalar_lea.hbm %s1, %s258
          %s260 = sshll.u32 %s253, 4
          %s261 = int_to_ptr.vmem [resolvable:$true] %s260
          %266 = dma.hbm_to_vmem [thread:$0]  %s259, 512, %s261, %s250, 128, 128, 8
        $region24: #{l_grad5.1} parent=15 // pred_fallthru
          _
        // Predicated region
        $region25: #{l_grad5.1} parent=15 // pred_check
          %p267 = pneg %p96
        $region26: #{l_grad5.1} parent=15 // pred_check_branch
          %269 = sbr.rel (%p267) target = $region28
        $region27: #{l_grad5.1} parent=15 // pred_region
          %s270 = sand.u32 %s24, 1
          %s271 = scalar_lea.sflag [#allocation5], %s270
          %s272 = sand.u32 %s86, 1
          %s273 = smul.addr %s272, 32
          %s274 = scalar_lea.vmem [#allocation6], %s273
          %s275 = smul.u32 4, %s24
          %s277 = ssub.s32 512, 512
          %278 = vsyncadd %s271, %s277
          %s279 = smul.addr %s275, 128
          %s280 = scalar_lea.hbm %s2, %s279
          %s281 = sshll.u32 %s274, 4
          %s282 = int_to_ptr.vmem [resolvable:$true] %s281
          %287 = dma.hbm_to_vmem [thread:$0]  %s280, 512, %s282, %s271, 128, 128, 8
        $region28: #{l_grad5.1} parent=15 // pred_fallthru
          _
        // Predicated region
        $region29: #{l_grad5.1} parent=15 // pred_check
          %p288 = pneg %p122
        $region30: #{l_grad5.1} parent=15 // pred_check_branch
          %290 = sbr.rel (%p288) target = $region32
        $region31: #{l_grad5.1} parent=15 // pred_region
          %s291 = sand.u32 %s24, 1
          %s292 = scalar_lea.sflag [#allocation8], %s291
          %s293 = sand.u32 %s112, 1
          %s294 = smul.addr %s293, 32
          %s295 = scalar_lea.vmem [#allocation7], %s294
          %s296 = smul.u32 4, %s24
          %s298 = ssub.s32 512, 512
          %299 = vsyncadd %s292, %s298
          %s300 = smul.addr %s296, 128
          %s301 = scalar_lea.hbm %s3, %s300
          %s302 = sshll.u32 %s295, 4
          %s303 = int_to_ptr.vmem [resolvable:$true] %s302
          %308 = dma.hbm_to_vmem [thread:$0]  %s301, 512, %s303, %s292, 128, 128, 8
        $region32: #{l_grad5.1} parent=15 // pred_fallthru
          _
        // Predicated region
        $region33: #{l_grad5.1} parent=15 // pred_check
          %p309 = pneg %p148
        $region34: #{l_grad5.1} parent=15 // pred_check_branch
          %311 = sbr.rel (%p309) target = $region36
        $region35: #{l_grad5.1} parent=15 // pred_region
          %s312 = sand.u32 %s24, 1
          %s313 = scalar_lea.sflag [#allocation8], %s312
          %s314 = sand.u32 %s138, 1
          %s315 = smul.addr %s314, 32
          %s316 = scalar_lea.vmem [#allocation9], %s315
          %s317 = smul.u32 4, %s24
          %s319 = ssub.s32 512, 512
          %320 = vsyncadd %s313, %s319
          %s321 = smul.addr %s317, 128
          %s322 = scalar_lea.hbm %s4, %s321
          %s323 = sshll.u32 %s316, 4
          %s324 = int_to_ptr.vmem [resolvable:$true] %s323
          %329 = dma.hbm_to_vmem [thread:$0]  %s322, 512, %s324, %s313, 128, 128, 8
        $region36: #{l_grad5.1} parent=15 // pred_fallthru
          _
        // Predicated region
        $region37: #{l_grad5.1} parent=15 // pred_check
          %p330 = pneg %p174
        $region38: #{l_grad5.1} parent=15 // pred_check_branch
          %332 = sbr.rel (%p330) target = $region40
        $region39: #{l_grad5.1} parent=15 // pred_region
          %s333 = sand.u32 %s164, 1
          %s334 = scalar_lea.sflag [#allocation11], %s333
          %s335 = sand.u32 %s164, 1
          %s336 = smul.addr %s335, 32
          %s337 = scalar_lea.vmem [#allocation10], %s336
          %s338 = smul.u32 4, %s24
          %s340 = ssub.s32 512, 512
          %341 = vsyncadd %s334, %s340
          %s342 = smul.addr %s338, 128
          %s343 = scalar_lea.hbm %s5, %s342
          %s344 = sshll.u32 %s337, 4
          %s345 = int_to_ptr.vmem [resolvable:$true] %s344
          %350 = dma.hbm_to_vmem [thread:$0]  %s343, 512, %s345, %s334, 128, 128, 8
        $region40: #{l_grad5.1} parent=15 // pred_fallthru
          _
      $region16: #{l_grad5.1} parent=5 // pred_fallthru
        _
      %p351 = scmp.le.s32.totalorder 1, %s24
      %p352 = scmp.lt.s32.totalorder %s24, 3
      %p353 = pnand %p351, %p352
      %p354 = pneg %p353
      // Predicated region
      $region41: #{l_grad5.1} parent=5 // pred_check
        _
      $region42: #{l_grad5.1} parent=5 // pred_check_branch
        %356 = sbr.rel (%p353) target = $region44
      $region43: #{l_grad5.1} parent=5 // pred_region
        %s357 = ssub.s32 %s24, 1
        %s358 = sand.u32 %s37, 1
        %s359 = scalar_lea.sflag [#allocation3], %s358
        %s360 = sand.u32 %s37, 1
        %s361 = smul.addr %s360, 32
        %s362 = scalar_lea.vmem [#allocation2], %s361
        // Predicated region
        $region45: #{l_grad5.1} parent=43 // pred_check
          %p363 = pneg %p50
        $region46: #{l_grad5.1} parent=43 // pred_check_branch
          %365 = sbr.rel (%p363) target = $region48
        $region47: #{l_grad5.1} parent=43 // pred_region
          %366 = dma.done %s359, 512
        $region48: #{l_grad5.1} parent=43 // pred_fallthru
          _
        %s367 = sand.u32 %s29, 1
        %s368 = scalar_lea.sflag [#allocation5], %s367
        %s369 = sand.u32 %s63, 1
        %s370 = smul.addr %s369, 32
        %s371 = scalar_lea.vmem [#allocation4], %s370
        // Predicated region
        $region49: #{l_grad5.1} parent=43 // pred_check
          %p372 = pneg %p76
        $region50: #{l_grad5.1} parent=43 // pred_check_branch
          %374 = sbr.rel (%p372) target = $region52
        $region51: #{l_grad5.1} parent=43 // pred_region
          %375 = dma.done %s368, 512
        $region52: #{l_grad5.1} parent=43 // pred_fallthru
          _
        %s376 = sand.u32 %s29, 1
        %s377 = scalar_lea.sflag [#allocation5], %s376
        %s378 = sand.u32 %s89, 1
        %s379 = smul.addr %s378, 32
        %s380 = scalar_lea.vmem [#allocation6], %s379
        // Predicated region
        $region53: #{l_grad5.1} parent=43 // pred_check
          %p381 = pneg %p102
        $region54: #{l_grad5.1} parent=43 // pred_check_branch
          %383 = sbr.rel (%p381) target = $region56
        $region55: #{l_grad5.1} parent=43 // pred_region
          %384 = dma.done %s377, 512
        $region56: #{l_grad5.1} parent=43 // pred_fallthru
          _
        %s385 = sand.u32 %s29, 1
        %s386 = scalar_lea.sflag [#allocation8], %s385
        %s387 = sand.u32 %s115, 1
        %s388 = smul.addr %s387, 32
        %s389 = scalar_lea.vmem [#allocation7], %s388
        // Predicated region
        $region57: #{l_grad5.1} parent=43 // pred_check
          %p390 = pneg %p128
        $region58: #{l_grad5.1} parent=43 // pred_check_branch
          %392 = sbr.rel (%p390) target = $region60
        $region59: #{l_grad5.1} parent=43 // pred_region
          %393 = dma.done %s386, 512
        $region60: #{l_grad5.1} parent=43 // pred_fallthru
          _
        %s394 = sand.u32 %s29, 1
        %s395 = scalar_lea.sflag [#allocation8], %s394
        %s396 = sand.u32 %s141, 1
        %s397 = smul.addr %s396, 32
        %s398 = scalar_lea.vmem [#allocation9], %s397
        // Predicated region
        $region61: #{l_grad5.1} parent=43 // pred_check
          %p399 = pneg %p154
        $region62: #{l_grad5.1} parent=43 // pred_check_branch
          %401 = sbr.rel (%p399) target = $region64
        $region63: #{l_grad5.1} parent=43 // pred_region
          %402 = dma.done %s395, 512
        $region64: #{l_grad5.1} parent=43 // pred_fallthru
          _
        %s403 = sand.u32 %s167, 1
        %s404 = scalar_lea.sflag [#allocation11], %s403
        %s405 = sand.u32 %s167, 1
        %s406 = smul.addr %s405, 32
        %s407 = scalar_lea.vmem [#allocation10], %s406
        // Predicated region
        $region65: #{l_grad5.1} parent=43 // pred_check
          %p408 = pneg %p180
        $region66: #{l_grad5.1} parent=43 // pred_check_branch
          %410 = sbr.rel (%p408) target = $region68
        $region67: #{l_grad5.1} parent=43 // pred_region
          %411 = dma.done %s404, 512
        $region68: #{l_grad5.1} parent=43 // pred_fallthru
          _
        %s412 = sand.u32 %s37, 1
        %s413 = scalar_lea.sflag [#allocation3], %s412
        %s414 = sand.u32 %s37, 1
        %s415 = smul.addr %s414, 32
        %s416 = scalar_lea.vmem [#allocation2], %s415
        %p417 = pneg %p50
        %p418 = pneg %p47
        %s419 = sand.u32 %s29, 1
        %s420 = scalar_lea.sflag [#allocation5], %s419
        %s421 = sand.u32 %s63, 1
        %s422 = smul.addr %s421, 32
        %s423 = scalar_lea.vmem [#allocation4], %s422
        %p424 = pneg %p76
        %p425 = pneg %p73
        %s426 = sand.u32 %s29, 1
        %s427 = scalar_lea.sflag [#allocation5], %s426
        %s428 = sand.u32 %s89, 1
        %s429 = smul.addr %s428, 32
        %s430 = scalar_lea.vmem [#allocation6], %s429
        %p431 = pneg %p102
        %p432 = pneg %p99
        %s433 = sand.u32 %s29, 1
        %s434 = scalar_lea.sflag [#allocation8], %s433
        %s435 = sand.u32 %s115, 1
        %s436 = smul.addr %s435, 32
        %s437 = scalar_lea.vmem [#allocation7], %s436
        %p438 = pneg %p128
        %p439 = pneg %p125
        %s440 = sand.u32 %s29, 1
        %s441 = scalar_lea.sflag [#allocation8], %s440
        %s442 = sand.u32 %s141, 1
        %s443 = smul.addr %s442, 32
        %s444 = scalar_lea.vmem [#allocation9], %s443
        %p445 = pneg %p154
        %p446 = pneg %p151
        %s447 = sand.u32 %s167, 1
        %s448 = scalar_lea.sflag [#allocation11], %s447
        %s449 = sand.u32 %s167, 1
        %s450 = smul.addr %s449, 32
        %s451 = scalar_lea.vmem [#allocation10], %s450
        %p452 = pneg %p180
        %p453 = pneg %p177
        %p454 = pneg %p206
        %p455 = pneg %p203
        %p456 = scmp.lt.s32.totalorder %s29, 1
        %s457 = scalar_select %p456, %s29, 1
        %s458 = scalar_lea.vmem %s6, %s457
        %s459 = smul.u32 4, %s29
        %s460 = smul.u32 4, %s29
        %s461 = smul.u32 4, %s29
        %s462 = smul.u32 4, %s29
        %s463 = smul.u32 4, %s29
        %s464 = smul.u32 4, %s29
        %p465 = scmp.lt.s32.totalorder %s29, 1
        %s466 = scalar_select %p465, %s29, 1
        %s467 = scalar_lea.vmem %s6, %s466
        %v468 = vld [vmem:[%s407] sm:$0xff]
        %v469 = vld [vmem:[%s407 + $0x8] sm:$0xff]
        %v470 = vld [vmem:[%s407 + $0x10] sm:$0xff]
        %v471 = vld [vmem:[%s407 + $0x18] sm:$0xff]
        %v472 = vlaneseq
        %v473 = vand.u32 %v472, 127
        %v474 = vlaneseq
        %v475 = vshrl.u32 %v474, 7
        %v476 = vadd.s32 %v475, 8
        %v477 = vadd.s32 %v475, 16
        %v478 = vadd.s32 %v475, 24
        %v479 = vand.u32 %v475, 15
        %v480 = vand.u32 %v476, 15
        %v481 = vand.u32 %v477, 15
        %v482 = vand.u32 %v478, 15
        %vm483 = vcmp.gt.s32.totalorder %v473, 0
        %vm484 = vcmp.lt.s32.totalorder %v473, 127
        %vm485 = vcmp.gt.s32.totalorder %v479, 0
        %vm486 = vcmp.gt.s32.totalorder %v480, 0
        %vm487 = vcmp.gt.s32.totalorder %v481, 0
        %vm488 = vcmp.gt.s32.totalorder %v482, 0
        %vm489 = vcmp.lt.s32.totalorder %v479, 15
        %vm490 = vcmp.lt.s32.totalorder %v480, 15
        %vm491 = vcmp.lt.s32.totalorder %v481, 15
        %vm492 = vcmp.lt.s32.totalorder %v482, 15
        %493 = vrot.lane.b32.xlu0 %v468, 1
        %v494 = vpop.permute.xlu0 %493
        %495 = vrot.lane.b32.xlu0 %v469, 1
        %v496 = vpop.permute.xlu0 %495
        %497 = vrot.lane.b32.xlu0 %v470, 1
        %v498 = vpop.permute.xlu0 %497
        %499 = vrot.lane.b32.xlu0 %v471, 1
        %v500 = vpop.permute.xlu0 %499
        %v501 = vsel %vm483, %v494, 0.0
        %v502 = vsel %vm483, %v496, 0.0
        %v503 = vsel %vm483, %v498, 0.0
        %v504 = vsel %vm483, %v500, 0.0
        %505 = vrot.lane.b32.xlu0 %v468, 127
        %v506 = vpop.permute.xlu0 %505
        %507 = vrot.lane.b32.xlu0 %v469, 127
        %v508 = vpop.permute.xlu0 %507
        %509 = vrot.lane.b32.xlu0 %v470, 127
        %v510 = vpop.permute.xlu0 %509
        %511 = vrot.lane.b32.xlu0 %v471, 127
        %v512 = vpop.permute.xlu0 %511
        %v513 = vsel %vm484, %v506, 0.0
        %v514 = vsel %vm484, %v508, 0.0
        %v515 = vsel %vm484, %v510, 0.0
        %v516 = vsel %vm484, %v512, 0.0
        %v517 = vsub.f32 %v513, %v501
        %v518 = vsub.f32 %v514, %v502
        %v519 = vsub.f32 %v515, %v503
        %v520 = vsub.f32 %v516, %v504
        %v521 = vmul.f32 %v468, 2.0
        %v522 = vmul.f32 %v469, 2.0
        %v523 = vmul.f32 %v470, 2.0
        %v524 = vmul.f32 %v471, 2.0
        %v525 = vadd.f32 %v501, %v521
        %v526 = vadd.f32 %v502, %v522
        %v527 = vadd.f32 %v503, %v523
        %v528 = vadd.f32 %v504, %v524
        %v529 = vadd.f32 %v525, %v513
        %v530 = vadd.f32 %v526, %v514
        %v531 = vadd.f32 %v527, %v515
        %v532 = vadd.f32 %v528, %v516
        %v533 = vrot.slane %v517, 7
        %v534 = vrot.slane %v518, 7
        %v535 = vrot.slane %v519, 7
        %v536 = vrot.slane %v520, 7
        %vm537 = vcmp.lt.s32.totalorder %v475, 1
        %v538 = vsel %vm537, %v535, %v536
        %v539 = vsel %vm537, %v534, %v535
        %v540 = vsel %vm537, %v533, %v534
        %v541 = vsel %vm537, %v536, %v533
        %v542 = vsel %vm485, %v541, 0.0
        %v543 = vsel %vm486, %v540, 0.0
        %v544 = vsel %vm487, %v539, 0.0
        %v545 = vsel %vm488, %v538, 0.0
        %v546 = vmul.f32 %v517, 2.0
        %v547 = vmul.f32 %v518, 2.0
        %v548 = vmul.f32 %v519, 2.0
        %v549 = vmul.f32 %v520, 2.0
        %v550 = vadd.f32 %v542, %v546
        %v551 = vadd.f32 %v543, %v547
        %v552 = vadd.f32 %v544, %v548
        %v553 = vadd.f32 %v545, %v549
        %v554 = vrot.slane %v517, 1
        %v555 = vrot.slane %v518, 1
        %v556 = vrot.slane %v519, 1
        %v557 = vrot.slane %v520, 1
        %vm558 = vcmp.lt.s32.totalorder %v475, 7
        %v559 = vsel %vm558, %v556, %v557
        %v560 = vsel %vm558, %v555, %v556
        %v561 = vsel %vm558, %v554, %v555
        %v562 = vsel %vm558, %v557, %v554
        %v563 = vsel %vm489, %v561, 0.0
        %v564 = vsel %vm490, %v560, 0.0
        %v565 = vsel %vm491, %v559, 0.0
        %v566 = vsel %vm492, %v562, 0.0
        %v567 = vadd.f32 %v550, %v563
        %v568 = vadd.f32 %v551, %v564
        %v569 = vadd.f32 %v552, %v565
        %v570 = vadd.f32 %v553, %v566
        %v571 = vrot.slane %v529, 7
        %v572 = vrot.slane %v530, 7
        %v573 = vrot.slane %v531, 7
        %v574 = vrot.slane %v532, 7
        %v575 = vsel %vm537, %v573, %v574
        %v576 = vsel %vm537, %v572, %v573
        %v577 = vsel %vm537, %v571, %v572
        %v578 = vsel %vm537, %v574, %v571
        %v579 = vsel %vm485, %v578, 0.0
        %v580 = vsel %vm486, %v577, 0.0
        %v581 = vsel %vm487, %v576, 0.0
        %v582 = vsel %vm488, %v575, 0.0
        %v583 = vrot.slane %v529, 1
        %v584 = vrot.slane %v530, 1
        %v585 = vrot.slane %v531, 1
        %v586 = vrot.slane %v532, 1
        %v587 = vsel %vm558, %v585, %v586
        %v588 = vsel %vm558, %v584, %v585
        %v589 = vsel %vm558, %v583, %v584
        %v590 = vsel %vm558, %v586, %v583
        %v591 = vsel %vm489, %v589, 0.0
        %v592 = vsel %vm490, %v588, 0.0
        %v593 = vsel %vm491, %v587, 0.0
        %v594 = vsel %vm492, %v590, 0.0
        %v595 = vsub.f32 %v579, %v591
        %v596 = vsub.f32 %v580, %v592
        %v597 = vsub.f32 %v581, %v593
        %v598 = vsub.f32 %v582, %v594
        %v599 = vand.u32 2147483647, %v567
        %v600 = vand.u32 2147483647, %v568
        %v601 = vand.u32 2147483647, %v569
        %v602 = vand.u32 2147483647, %v570
        %v603 = vand.u32 2147483647, %v595
        %v604 = vand.u32 2147483647, %v596
        %v605 = vand.u32 2147483647, %v597
        %v606 = vand.u32 2147483647, %v598
        %v607 = vadd.f32 %v599, %v603
        %v608 = vadd.f32 %v600, %v604
        %v609 = vadd.f32 %v601, %v605
        %v610 = vadd.f32 %v602, %v606
        %v611 = vld [vmem:[%s362] sm:$0xff]
        %v612 = vld [vmem:[%s362 + $0x8] sm:$0xff]
        %v613 = vld [vmem:[%s362 + $0x10] sm:$0xff]
        %v614 = vld [vmem:[%s362 + $0x18] sm:$0xff]
        %v615 = vld [vmem:[%s371] sm:$0xff]
        %v616 = vld [vmem:[%s371 + $0x8] sm:$0xff]
        %v617 = vld [vmem:[%s371 + $0x10] sm:$0xff]
        %v618 = vld [vmem:[%s371 + $0x18] sm:$0xff]
        %v619 = vmax.f32 %v611, %v615
        %v620 = vmax.f32 %v612, %v616
        %v621 = vmax.f32 %v613, %v617
        %v622 = vmax.f32 %v614, %v618
        %v623 = vld [vmem:[%s380] sm:$0xff]
        %v624 = vld [vmem:[%s380 + $0x8] sm:$0xff]
        %v625 = vld [vmem:[%s380 + $0x10] sm:$0xff]
        %v626 = vld [vmem:[%s380 + $0x18] sm:$0xff]
        %v627 = vld [vmem:[%s389] sm:$0xff]
        %v628 = vld [vmem:[%s389 + $0x8] sm:$0xff]
        %v629 = vld [vmem:[%s389 + $0x10] sm:$0xff]
        %v630 = vld [vmem:[%s389 + $0x18] sm:$0xff]
        %v631 = vmax.f32 %v623, %v627
        %v632 = vmax.f32 %v624, %v628
        %v633 = vmax.f32 %v625, %v629
        %v634 = vmax.f32 %v626, %v630
        %v635 = vmax.f32 %v619, %v631
        %v636 = vmax.f32 %v620, %v632
        %v637 = vmax.f32 %v621, %v633
        %v638 = vmax.f32 %v622, %v634
        %v639 = vld [vmem:[%s398] sm:$0xff]
        %v640 = vld [vmem:[%s398 + $0x8] sm:$0xff]
        %v641 = vld [vmem:[%s398 + $0x10] sm:$0xff]
        %v642 = vld [vmem:[%s398 + $0x18] sm:$0xff]
        %v643 = vmax.f32 %v635, %v639
        %v644 = vmax.f32 %v636, %v640
        %v645 = vmax.f32 %v637, %v641
        %v646 = vmax.f32 %v638, %v642
        %v647 = vsub.f32 %v607, %v643
        %v648 = vsub.f32 %v608, %v644
        %v649 = vsub.f32 %v609, %v645
        %v650 = vsub.f32 %v610, %v646
        %v651 = vand.u32 2147483647, %v647
        %v652 = vand.u32 2147483647, %v648
        %v653 = vand.u32 2147483647, %v649
        %v654 = vand.u32 2147483647, %v650
        %v655 = vadd.f32 %v651, %v652
        %v656 = vadd.f32 %v655, %v653
        %v657 = vadd.f32 %v656, %v654
        %v658 = vrot.slane %v657, 4
        %v659 = vadd.f32 %v657, %v658
        %v660 = vrot.slane %v659, 2
        %v661 = vadd.f32 %v659, %v660
        %v662 = vrot.slane %v661, 1
        %v663 = vadd.f32 %v661, %v662
        %664 = vst [vmem:[%s467] sm:$0x1] %v663
        %p665 = scmp.lt.s32.totalorder %s29, 1
        %s666 = scalar_select %p665, %s29, 1
        %s667 = scalar_lea.vmem %s6, %s666
        // Predicated region
        $region69: #{l_grad5.1} parent=43 // pred_check
          %p668 = pneg %p203
        $region70: #{l_grad5.1} parent=43 // pred_check_branch
          %670 = sbr.rel (%p668) target = $region72
        $region71: #{l_grad5.1} parent=43 // pred_region
          _
        $region72: #{l_grad5.1} parent=43 // pred_fallthru
          _
      $region44: #{l_grad5.1} parent=5 // pred_fallthru
        _
      %p671 = scmp.le.s32.totalorder 2, %s24
      // Predicated region
      $region73: #{l_grad5.1} parent=5 // pred_check
        %p672 = pneg %p671
      $region74: #{l_grad5.1} parent=5 // pred_check_branch
        %674 = sbr.rel (%p672) target = $region76
      $region75: #{l_grad5.1} parent=5 // pred_region
        %s675 = ssub.s32 %s24, 2
        // Predicated region
        $region77: #{l_grad5.1} parent=75 // pred_check
          %p676 = pneg %p209
        $region78: #{l_grad5.1} parent=75 // pred_check_branch
          %678 = sbr.rel (%p676) target = $region80
        $region79: #{l_grad5.1} parent=75 // pred_region
          %p679 = scmp.lt.s32.totalorder %s30, 1
          %s680 = scalar_select %p679, %s30, 1
          %s681 = scalar_lea.vmem %s6, %s680
        $region80: #{l_grad5.1} parent=75 // pred_fallthru
          _
      $region76: #{l_grad5.1} parent=5 // pred_fallthru
        _
    $region6: #{l_grad5.1} parent=1 // loop_footer
      %s28 = sadd.s32 1, %s24
    $region7: #{l_grad5.1} parent=1 // loop_footer_branch
      %23 = sbr.rel target = $region3
    $region8: #{l_grad5.1} parent=1 // loop_exit
      _
    %682 = vsyncpa [#allocation3], 1
    %s683 = scalar_lea.sflag [#allocation3], 1
    %684 = vsyncpa %s683, 1
    %685 = vsyncpa [#allocation5], 1
    %s686 = scalar_lea.sflag [#allocation5], 1
    %687 = vsyncpa %s686, 1
    %688 = vsyncpa [#allocation8], 1
    %s689 = scalar_lea.sflag [#allocation8], 1
    %690 = vsyncpa %s689, 1
    %691 = vsyncpa [#allocation11], 1
    %s692 = scalar_lea.sflag [#allocation11], 1
    %693 = vsyncpa %s692, 1

</llo_original>
